<compile_context>
chip_gen: v5e
topology: v5e:2x2
jax: 0.10.0
libtpu: 0.0.40
codegen_flags: <defaults>
</compile_context>

<pallas_src>
import functools

import jax
import jax.numpy as jnp
from jax.experimental import pallas as pl
from jax.experimental.pallas import tpu as pltpu

LANE = 128
SUBLANE = 8
MAX_TM = 2048            # rows per grid step (f32: 3 in * 2 bufs * 1 MiB ~ 6 MiB VMEM)
MIN_PALLAS_ELEMS = 16384  # below this the pallas_call launch overhead dominates


def _choose_tm(rows):
    """Row tile: as large as possible, but >= 2 grid steps when we can afford it
    (lets 'parallel' shard across both v7x TensorCores). Always a multiple of 8
    unless the whole array has fewer than 8 rows."""
    if rows < SUBLANE:
        return rows
    half = ((rows + 1) // 2 // SUBLANE) * SUBLANE
    return max(SUBLANE, min(MAX_TM, half))


def _block_partial_sum(loss):
    """(nrow, 128) f32 -> (8, 128) partial sums, pure vreg adds (no cross-lane
    work). Split into k interleaved accumulator chains for ILP on v7x."""
    nrow = loss.shape[0]
    if nrow % SUBLANE != 0:
        # Tiny block (< 8 rows total): one small sublane reduce placed in row 0.
        row_id = jax.lax.broadcasted_iota(jnp.int32, (SUBLANE, LANE), 0)
        return jnp.where(row_id == 0,
                         jnp.sum(loss, axis=0, keepdims=True), 0.0)
    n_sub = nrow // SUBLANE
    k = next(k for k in (8, 4, 2, 1) if n_sub % k == 0)
    tiles = loss.reshape(n_sub // k, k, SUBLANE, LANE)
    # sum(axis=0): k independent accumulation chains; then a k-way tree add.
    return tiles.sum(axis=0).sum(axis=0)


def _margin_rank_none_kernel(margin, loss_weight, compute_dtype,
                             x1_ref, x2_ref, t_ref, o_ref):
    """reduction='none': elementwise hinge, loss_weight folded in."""
    x1 = x1_ref[...].astype(compute_dtype)
    x2 = x2_ref[...].astype(compute_dtype)
    t = t_ref[...].astype(compute_dtype)
    loss = jnp.maximum(margin - t * (x1 - x2), 0)
    if loss_weight != 1.0:
        loss = loss * loss_weight
    o_ref[...] = loss.astype(o_ref.dtype)


def _margin_rank_partial_sum_kernel(margin, rows_total, tm, needs_row_mask,
                                    x1_ref, x2_ref, t_ref, o_ref):
    """reduction='sum'/'mean': per-block lane-dense (8,128) partial sums."""
    x1 = x1_ref[...].astype(jnp.float32)
    x2 = x2_ref[...].astype(jnp.float32)
    t = t_ref[...].astype(jnp.float32)
    loss = jnp.maximum(margin - t * (x1 - x2), 0.0)

    if not needs_row_mask:
        o_ref[...] = _block_partial_sum(loss)
        return

    # Only the last grid step can hold a row-partial block: gate the mask
    # there so every other block carries zero masking vreg ops.
    i = pl.program_id(0)
    is_last = i == pl.num_programs(0) - 1

    @pl.when(jnp.logical_not(is_last))
    def _():
        o_ref[...] = _block_partial_sum(loss)

    @pl.when(is_last)
    def _():
        # Block-local row index vs. scalar remainder (no global element index,
        # no int32 overflow). jnp.where (not arithmetic masking) so NaN/Inf
        # garbage in the unspecified tail rows never reaches the sum.
        valid_rows = rows_total - i * tm
        r = jax.lax.broadcasted_iota(jnp.int32, loss.shape, 0)
        o_ref[...] = _block_partial_sum(jnp.where(r < valid_rows, loss, 0.0))


def _xla_margin_ranking_loss(x1, x2, t, loss_weight, margin, reduction, out_dtype):
    loss = jnp.maximum(margin - t * (x1 - x2), 0)
    if reduction == "mean":
        loss = jnp.mean(loss)
    elif reduction == "sum":
        loss = jnp.sum(loss)
    return (loss_weight * loss).astype(out_dtype)


def margin_ranking_loss(input1, input2, target, *, loss_weight=1.0, margin=0.0,
                        reduction="mean"):
    if reduction not in ("none", "mean", "sum"):
        raise ValueError(f"Unsupported reduction mode: {reduction}")

    orig_shape = input1.shape
    n = int(input1.size)
    out_dtype = jnp.result_type(input1.dtype, input2.dtype, target.dtype)
    margin = float(margin)
    loss_weight = float(loss_weight)

    # Tiny inputs (including n == 0, where 'mean' gives nan like torch): let
    # XLA fuse the whole loss into one trivial kernel.
    if n < MIN_PALLAS_ELEMS:
        out = _xla_margin_ranking_loss(input1, input2, target,
                                       loss_weight, margin, reduction, out_dtype)
        return out if reduction != "none" else out.reshape(orig_shape)

    x1 = input1.reshape(-1)
    x2 = input2.reshape(-1)
    t = target.reshape(-1)

    rows = n // LANE          # 128-aligned bulk rows
    n_bulk = rows * LANE
    tail = n - n_bulk         # < 128 trailing elements, handled by XLA epilogue

    if tail:
        x1b, x2b, tb = x1[:n_bulk], x2[:n_bulk], t[:n_bulk]
        x1t, x2t, tt = x1[n_bulk:], x2[n_bulk:], t[n_bulk:]
    else:
        x1b, x2b, tb = x1, x2, t
    x1b = x1b.reshape(rows, LANE)
    x2b = x2b.reshape(rows, LANE)
    tb = tb.reshape(rows, LANE)

    tm = _choose_tm(rows)
    grid_sz = pl.cdiv(rows, tm)
    in_spec = pl.BlockSpec((tm, LANE), lambda i: (i, 0))

    if reduction == "none":
        # bf16 inputs: keep the hinge in bf16 (halves VPU ops / vreg pressure
        # on v6e/v7x; still lowers correctly on v5e).
        compute_dtype = jnp.bfloat16 if out_dtype == jnp.bfloat16 else jnp.float32
        bulk_out = pl.pallas_call(
            functools.partial(_margin_rank_none_kernel,
                              margin, loss_weight, compute_dtype),
            out_shape=jax.ShapeDtypeStruct((rows, LANE), out_dtype),
            grid=(grid_sz,),
            in_specs=[in_spec, in_spec, in_spec],
            out_specs=pl.BlockSpec((tm, LANE), lambda i: (i, 0)),
            compiler_params=pltpu.CompilerParams(
                dimension_semantics=("parallel",)),
        )(x1b, x2b, tb)
        if not tail:
            return bulk_out.reshape(orig_shape)
        tail_loss = (loss_weight * jnp.maximum(
            margin - tt.astype(jnp.float32)
            * (x1t.astype(jnp.float32) - x2t.astype(jnp.float32)), 0.0)
        ).astype(out_dtype)
        return jnp.concatenate([bulk_out.reshape(-1), tail_loss]).reshape(orig_shape)

    # sum / mean: per-block (8, 128) partial sums (parallel grid), tiny finish
    # outside the kernel.
    needs_row_mask = (rows % tm) != 0
    partials = pl.pallas_call(
        functools.partial(_margin_rank_partial_sum_kernel,
                          margin, rows, tm, needs_row_mask),
        out_shape=jax.ShapeDtypeStruct((grid_sz * SUBLANE, LANE), jnp.float32),
        grid=(grid_sz,),
        in_specs=[in_spec, in_spec, in_spec],
        out_specs=pl.BlockSpec((SUBLANE, LANE), lambda i: (i, 0)),
        compiler_params=pltpu.CompilerParams(
            dimension_semantics=("parallel",)),
    )(x1b, x2b, tb)

    s = jnp.sum(partials)
    if tail:
        s = s + jnp.sum(jnp.maximum(
            margin - tt.astype(jnp.float32)
            * (x1t.astype(jnp.float32) - x2t.astype(jnp.float32)), 0.0))
    if reduction == "mean":
        s = s / n
    return (loss_weight * s).astype(out_dtype)


def _reference(input1, input2, target, *, loss_weight=1.0, margin=0.0,
               reduction="mean"):
    loss = jnp.maximum(-target * (input1 - input2) + margin, 0.0)
    if reduction == "mean":
        loss = jnp.mean(loss)
    elif reduction == "sum":
        loss = jnp.sum(loss)
    return loss_weight * loss


if __name__ == "__main__":
    key = jax.random.PRNGKey(0)

    loss_weight = 2.0
    margin = 0.5

    # Small shapes consistent with a generic elementwise ranking loss:
    #   (2,4,16,16)  -> tiny path (XLA fallback)
    #   (2,8,32,128) -> lane-aligned bulk, 2 parallel grid steps, no masking
    #   (2,4,67,33)  -> ragged n (bulk kernel + <128-element tail epilogue),
    #                   row-partial last block (masked under pl.when)
    shapes = [(2, 4, 16, 16), (2, 8, 32, 128), (2, 4, 67, 33)]

    ok = True
    for shape in shapes:
        key, k1, k2, k3 = jax.random.split(key, 4)
        input1 = jax.random.normal(k1, shape, dtype=jnp.float32)
        input2 = jax.random.normal(k2, shape, dtype=jnp.float32)
        target = jnp.sign(jax.random.normal(k3, shape, dtype=jnp.float32))
        target = jnp.where(target == 0, 1.0, target)  # targets in {-1, +1}

        for reduction in ("mean", "sum", "none"):
            out = margin_ranking_loss(
                input1, input2, target,
                loss_weight=loss_weight, margin=margin, reduction=reduction)
            out = jax.block_until_ready(out)
            ref = _reference(
                input1, input2, target,
                loss_weight=loss_weight, margin=margin, reduction=reduction)
            if not jnp.allclose(out, ref, atol=1e-4, rtol=5e-5):
                ok = False
                print(f"MISMATCH for shape={shape} reduction={reduction}")

    if ok:
        print("KERNEL_OK")
</pallas_src>

<mosaic_0001>
module attributes {stable_mosaic.version = 11 : i64} {
  func.func @_margin_rank_partial_sum_kernel(%arg0: i32, %arg1: memref<256x128xf32, #tpu.memory_space<vmem>>, %arg2: memref<256x128xf32, #tpu.memory_space<vmem>>, %arg3: memref<256x128xf32, #tpu.memory_space<vmem>>, %arg4: memref<8x128xf32, #tpu.memory_space<vmem>>) attributes {dimension_semantics = [#tpu.dimension_semantics<parallel>], iteration_bounds = array<i64: 2>, scalar_prefetch = 0 : i64, scratch_operands = 0 : i64, tpu.core_type = #tpu.core_type<tc>, window_params = [{transform_indices = @transform_0, window_bounds = array<i64: 256, 128>}, {transform_indices = @transform_1, window_bounds = array<i64: 256, 128>}, {transform_indices = @transform_2, window_bounds = array<i64: 256, 128>}, {transform_indices = @transform_3, window_bounds = array<i64: 8, 128>}]} {
    %c0 = arith.constant 0 : index
    %c0_0 = arith.constant 0 : index
    %0 = vector.load %arg1[%c0, %c0_0] : memref<256x128xf32, #tpu.memory_space<vmem>>, vector<256x128xf32>
    %c0_1 = arith.constant 0 : index
    %c0_2 = arith.constant 0 : index
    %1 = vector.load %arg2[%c0_1, %c0_2] : memref<256x128xf32, #tpu.memory_space<vmem>>, vector<256x128xf32>
    %c0_3 = arith.constant 0 : index
    %c0_4 = arith.constant 0 : index
    %2 = vector.load %arg3[%c0_3, %c0_4] : memref<256x128xf32, #tpu.memory_space<vmem>>, vector<256x128xf32>
    %3 = arith.subf %0, %1 : vector<256x128xf32>
    %4 = arith.mulf %2, %3 : vector<256x128xf32>
    %cst = arith.constant 5.000000e-01 : f32
    %5 = vector.broadcast %cst : f32 to vector<256x128xf32>
    %6 = arith.subf %5, %4 : vector<256x128xf32>
    %cst_5 = arith.constant 0.000000e+00 : f32
    %7 = vector.broadcast %cst_5 : f32 to vector<256x128xf32>
    %8 = arith.maximumf %6, %7 : vector<256x128xf32>
    %9 = vector.shape_cast %8 : vector<256x128xf32> to vector<4x8x8x128xf32>
    %cst_6 = arith.constant dense<0.000000e+00> : vector<8x8x128xf32>
    %10 = vector.multi_reduction <add>, %9, %cst_6 [0] : vector<4x8x8x128xf32> to vector<8x8x128xf32>
    %cst_7 = arith.constant dense<0.000000e+00> : vector<8x128xf32>
    %11 = vector.multi_reduction <add>, %10, %cst_7 [0] : vector<8x8x128xf32> to vector<8x128xf32>
    %c0_8 = arith.constant 0 : index
    %c0_9 = arith.constant 0 : index
    %12 = vector.load %arg4[%c0_8, %c0_9] : memref<8x128xf32, #tpu.memory_space<vmem>>, vector<8x128xf32>
    tpu.vector_store %arg4[%c0_8, %c0_9], %11 {strides = array<i32>} : memref<8x128xf32, #tpu.memory_space<vmem>>, vector<8x128xf32>,
    return
  }
  func.func @transform_0(%arg0: i32) -> (i32, i32) {
    %c0_i32 = arith.constant 0 : i32
    %c0_i32_0 = arith.constant 0 : i32
    return %arg0, %c0_i32 : i32, i32
  }
  func.func @transform_1(%arg0: i32) -> (i32, i32) {
    %c0_i32 = arith.constant 0 : i32
    %c0_i32_0 = arith.constant 0 : i32
    return %arg0, %c0_i32 : i32, i32
  }
  func.func @transform_2(%arg0: i32) -> (i32, i32) {
    %c0_i32 = arith.constant 0 : i32
    %c0_i32_0 = arith.constant 0 : i32
    return %arg0, %c0_i32 : i32, i32
  }
  func.func @transform_3(%arg0: i32) -> (i32, i32) {
    %c0_i32 = arith.constant 0 : i32
    %c0_i32_0 = arith.constant 0 : i32
    return %arg0, %c0_i32 : i32, i32
  }
}

</mosaic_0001>

<llo_original>
// kernel: tpu_custom_call.1
$region0: #{tpu_custom_call.1}
  #allocation0 [shape = 'u32[]', space=smem, size = 0x4, offset = 0x4, fixed_abs, tag = 'smem constant byte address 0x4 - core index']
  #allocation1 [shape = 'u32[72,128]{1,0:T(1,128)}', space=vmem, size = 0x9000, scoped, tag = 'internal scratch']
  %s0 = inlined_call_operand.hbm [shape: f32[512,128], index: 0, kind: input, shape index: {}]
  %s1 = inlined_call_operand.hbm [shape: f32[512,128], index: 1, kind: input, shape index: {}]
  %s2 = inlined_call_operand.hbm [shape: f32[512,128], index: 2, kind: input, shape index: {}]
  %s3 = inlined_call_operand.hbm [shape: f32[16,128], index: 3, kind: output, shape index: {}]
  %s4 = sld [smem:[#allocation0]]
  $region57: #{tpu_custom_call.1} parent=0
    _
  %s6 = ssub.s32 1, %s4
  %s7 = scalar_select 0, %s6, %s4
  $region1: #{tpu_custom_call.1} parent=0
    #allocation2 [shape = 'u8[262144]{0}', space=vmem, size = 0x40000, scoped, tag = 'input window, operand 0']
    #allocation3 [shape = 's32[2]{0}', space=sflag, size = 0x8, scoped, tag = 'scoped memory for tpu_custom_call.1']
    #allocation4 [shape = 's32[2]{0}', space=sflag, size = 0x8, scoped, tag = 'scoped memory for tpu_custom_call.1']
    #allocation5 [shape = 'u8[262144]{0}', space=vmem, size = 0x40000, scoped, tag = 'input window, operand 1']
    #allocation6 [shape = 's32[2]{0}', space=sflag, size = 0x8, scoped, tag = 'scoped memory for tpu_custom_call.1']
    #allocation7 [shape = 'u8[262144]{0}', space=vmem, size = 0x40000, scoped, tag = 'input window, operand 2']
    #allocation8 [shape = 'u8[8192]{0}', space=vmem, size = 0x2000, scoped, tag = 'output window, operand 0']
    %8 = vsyncpa [#allocation3], 0
    %s9 = scalar_lea.sflag [#allocation3], 1
    %10 = vsyncpa %s9, 0
    %11 = vsyncpa [#allocation6], 0
    %s12 = scalar_lea.sflag [#allocation6], 1
    %13 = vsyncpa %s12, 0
    %14 = vsyncpa [#allocation4], 0
    %s15 = scalar_lea.sflag [#allocation4], 1
    %16 = vsyncpa %s15, 0
    loop: start=0, step=1, limit=4
    $region2: #{tpu_custom_call.1} parent=1 // loop_pre_header
      _
    $region3: #{tpu_custom_call.1} parent=1 // loop_header
      %s18 = sphi 0, %s22
      %p19 = scmp.ge.s32.totalorder %s18, 4
      %s28 = sphi 0, %s30
      %s31 = sphi 0, %s28
      %s32 = sphi 0, %s31
      %s48 = sphi 0, %s32
      %s54 = sphi 0, %s56
      %s57 = sphi 0, %s54
      %s58 = sphi 0, %s57
      %s74 = sphi 0, %s58
      %s80 = sphi 0, %s82
      %s83 = sphi 0, %s80
      %s84 = sphi 0, %s83
      %s100 = sphi 0, %s84
      %s106 = sphi 0, %s108
      %s109 = sphi 0, %s106
      %s110 = sphi 0, %s109
      %s126 = sphi 0, %s110
    $region4: #{tpu_custom_call.1} parent=1 // loop_header_branch
      %21 = sbr.rel (%p19) target = $region8
    $region5: #{tpu_custom_call.1} parent=1 // loop_body
      %s23 = ssub.s32 %s18, 1
      %s24 = ssub.s32 %s18, 2
      %s25 = sadd.s32 %s18, 1
      %s26 = ssub.s32 %s18, %s25
      %p27 = scmp.eq.s32.totalorder %s26, 0
      %s29 = sadd.s32 %s28, 1
      %s30 = scalar_select %p27, %s28, %s29
      %p33 = pneg %p27
      %p34 = scmp.eq.s32.totalorder %s18, 1
      %p35 = por %p33, %p34
      %p36 = scmp.ne.s32.totalorder %s28, %s31
      %p37 = scmp.eq.s32.totalorder %s18, 0
      %p38 = por %p36, %p37
      %p39 = scmp.ne.s32.totalorder %s28, %s31
      %p40 = scmp.eq.s32.totalorder %s23, 1
      %p41 = por %p39, %p40
      %p42 = scmp.ne.s32.totalorder %s31, %s32
      %p43 = scmp.eq.s32.totalorder %s23, 0
      %p44 = por %p42, %p43
      %p45 = scmp.ne.s32.totalorder %s31, %s32
      %p46 = scmp.eq.s32.totalorder %s24, 1
      %p47 = por %p45, %p46
      %p49 = scmp.ne.s32.totalorder %s32, %s48
      %p50 = scmp.eq.s32.totalorder %s24, 0
      %p51 = por %p49, %p50
      %s52 = ssub.s32 %s18, %s25
      %p53 = scmp.eq.s32.totalorder %s52, 0
      %s55 = sadd.s32 %s54, 1
      %s56 = scalar_select %p53, %s54, %s55
      %p59 = pneg %p53
      %p60 = scmp.eq.s32.totalorder %s18, 1
      %p61 = por %p59, %p60
      %p62 = scmp.ne.s32.totalorder %s54, %s57
      %p63 = scmp.eq.s32.totalorder %s18, 0
      %p64 = por %p62, %p63
      %p65 = scmp.ne.s32.totalorder %s54, %s57
      %p66 = scmp.eq.s32.totalorder %s23, 1
      %p67 = por %p65, %p66
      %p68 = scmp.ne.s32.totalorder %s57, %s58
      %p69 = scmp.eq.s32.totalorder %s23, 0
      %p70 = por %p68, %p69
      %p71 = scmp.ne.s32.totalorder %s57, %s58
      %p72 = scmp.eq.s32.totalorder %s24, 1
      %p73 = por %p71, %p72
      %p75 = scmp.ne.s32.totalorder %s58, %s74
      %p76 = scmp.eq.s32.totalorder %s24, 0
      %p77 = por %p75, %p76
      %s78 = ssub.s32 %s18, %s25
      %p79 = scmp.eq.s32.totalorder %s78, 0
      %s81 = sadd.s32 %s80, 1
      %s82 = scalar_select %p79, %s80, %s81
      %p85 = pneg %p79
      %p86 = scmp.eq.s32.totalorder %s18, 1
      %p87 = por %p85, %p86
      %p88 = scmp.ne.s32.totalorder %s80, %s83
      %p89 = scmp.eq.s32.totalorder %s18, 0
      %p90 = por %p88, %p89
      %p91 = scmp.ne.s32.totalorder %s80, %s83
      %p92 = scmp.eq.s32.totalorder %s23, 1
      %p93 = por %p91, %p92
      %p94 = scmp.ne.s32.totalorder %s83, %s84
      %p95 = scmp.eq.s32.totalorder %s23, 0
      %p96 = por %p94, %p95
      %p97 = scmp.ne.s32.totalorder %s83, %s84
      %p98 = scmp.eq.s32.totalorder %s24, 1
      %p99 = por %p97, %p98
      %p101 = scmp.ne.s32.totalorder %s84, %s100
      %p102 = scmp.eq.s32.totalorder %s24, 0
      %p103 = por %p101, %p102
      %s104 = ssub.s32 %s18, %s25
      %p105 = scmp.eq.s32.totalorder %s104, 0
      %s107 = sadd.s32 %s106, 1
      %s108 = scalar_select %p105, %s106, %s107
      %p111 = pneg %p105
      %p112 = scmp.eq.s32.totalorder %s18, 1
      %p113 = por %p111, %p112
      %p114 = scmp.ne.s32.totalorder %s106, %s109
      %p115 = scmp.eq.s32.totalorder %s18, 0
      %p116 = por %p114, %p115
      %p117 = scmp.ne.s32.totalorder %s106, %s109
      %p118 = scmp.eq.s32.totalorder %s23, 1
      %p119 = por %p117, %p118
      %p120 = scmp.ne.s32.totalorder %s109, %s110
      %p121 = scmp.eq.s32.totalorder %s23, 0
      %p122 = por %p120, %p121
      %p123 = scmp.ne.s32.totalorder %s109, %s110
      %p124 = scmp.eq.s32.totalorder %s24, 1
      %p125 = por %p123, %p124
      %p127 = scmp.ne.s32.totalorder %s110, %s126
      %p128 = scmp.eq.s32.totalorder %s24, 0
      %p129 = por %p127, %p128
      %p130 = scmp.le.s32.totalorder 1, %s18
      %p131 = scmp.lt.s32.totalorder %s18, 3
      %p132 = pnand %p130, %p131
      %p133 = pneg %p132
      // Predicated region
      $region9: #{tpu_custom_call.1} parent=5 // pred_check
        _
      $region10: #{tpu_custom_call.1} parent=5 // pred_check_branch
        %135 = sbr.rel (%p132) target = $region12
      $region11: #{tpu_custom_call.1} parent=5 // pred_region
        %s136 = ssub.s32 %s18, 1
      $region12: #{tpu_custom_call.1} parent=5 // pred_fallthru
        _
      %p137 = scmp.lt.s32.totalorder %s18, 2
      // Predicated region
      $region13: #{tpu_custom_call.1} parent=5 // pred_check
        %p138 = pneg %p137
      $region14: #{tpu_custom_call.1} parent=5 // pred_check_branch
        %140 = sbr.rel (%p138) target = $region16
      $region15: #{tpu_custom_call.1} parent=5 // pred_region
        // Predicated region
        $region17: #{tpu_custom_call.1} parent=15 // pred_check
          %p141 = pneg %p38
        $region18: #{tpu_custom_call.1} parent=15 // pred_check_branch
          %143 = sbr.rel (%p141) target = $region20
        $region19: #{tpu_custom_call.1} parent=15 // pred_region
          %s144 = sand.u32 %s28, 1
          %s145 = scalar_lea.sflag [#allocation3], %s144
          %s146 = sand.u32 %s28, 1
          %s147 = smul.addr %s146, 256
          %s148 = scalar_lea.vmem [#allocation2], %s147
          %s149 = smul.u32 32, %s18
          %151 = vsyncadd %s145, 0
          %s152 = smul.addr %s149, 8
          %s153 = scalar_lea.hbm %s0, %s152
          %s154 = sshll.u32 %s153, 4
          %s155 = int_to_ptr.hbm [resolvable:$true] %s154
          %s156 = sshll.u32 %s148, 4
          %s157 = int_to_ptr.vmem [resolvable:$true] %s156
          %162 = dma.hbm_to_vmem [thread:$0]  %s155, 4096, %s157, %s145, 128, 128, 8
        $region20: #{tpu_custom_call.1} parent=15 // pred_fallthru
          _
        // Predicated region
        $region21: #{tpu_custom_call.1} parent=15 // pred_check
          %p163 = pneg %p64
        $region22: #{tpu_custom_call.1} parent=15 // pred_check_branch
          %165 = sbr.rel (%p163) target = $region24
        $region23: #{tpu_custom_call.1} parent=15 // pred_region
          %s166 = sand.u32 %s18, 1
          %s167 = scalar_lea.sflag [#allocation6], %s166
          %s168 = sand.u32 %s54, 1
          %s169 = smul.addr %s168, 256
          %s170 = scalar_lea.vmem [#allocation5], %s169
          %s171 = smul.u32 32, %s18
          %173 = vsyncadd %s167, 0
          %s174 = smul.addr %s171, 8
          %s175 = scalar_lea.hbm %s1, %s174
          %s176 = sshll.u32 %s175, 4
          %s177 = int_to_ptr.hbm [resolvable:$true] %s176
          %s178 = sshll.u32 %s170, 4
          %s179 = int_to_ptr.vmem [resolvable:$true] %s178
          %184 = dma.hbm_to_vmem [thread:$0]  %s177, 4096, %s179, %s167, 128, 128, 8
        $region24: #{tpu_custom_call.1} parent=15 // pred_fallthru
          _
        // Predicated region
        $region25: #{tpu_custom_call.1} parent=15 // pred_check
          %p185 = pneg %p90
        $region26: #{tpu_custom_call.1} parent=15 // pred_check_branch
          %187 = sbr.rel (%p185) target = $region28
        $region27: #{tpu_custom_call.1} parent=15 // pred_region
          %s188 = sand.u32 %s18, 1
          %s189 = scalar_lea.sflag [#allocation6], %s188
          %s190 = sand.u32 %s80, 1
          %s191 = smul.addr %s190, 256
          %s192 = scalar_lea.vmem [#allocation7], %s191
          %s193 = smul.u32 32, %s18
          %195 = vsyncadd %s189, 0
          %s196 = smul.addr %s193, 8
          %s197 = scalar_lea.hbm %s2, %s196
          %s198 = sshll.u32 %s197, 4
          %s199 = int_to_ptr.hbm [resolvable:$true] %s198
          %s200 = sshll.u32 %s192, 4
          %s201 = int_to_ptr.vmem [resolvable:$true] %s200
          %206 = dma.hbm_to_vmem [thread:$0]  %s199, 4096, %s201, %s189, 128, 128, 8
        $region28: #{tpu_custom_call.1} parent=15 // pred_fallthru
          _
      $region16: #{tpu_custom_call.1} parent=5 // pred_fallthru
        _
      %p207 = scmp.le.s32.totalorder 1, %s18
      %p208 = scmp.lt.s32.totalorder %s18, 3
      %p209 = pnand %p207, %p208
      %p210 = pneg %p209
      // Predicated region
      $region29: #{tpu_custom_call.1} parent=5 // pred_check
        _
      $region30: #{tpu_custom_call.1} parent=5 // pred_check_branch
        %212 = sbr.rel (%p209) target = $region32
      $region31: #{tpu_custom_call.1} parent=5 // pred_region
        %s213 = ssub.s32 %s18, 1
        %s214 = sand.u32 %s31, 1
        %s215 = scalar_lea.sflag [#allocation3], %s214
        %s216 = sand.u32 %s31, 1
        %s217 = smul.addr %s216, 256
        %s218 = scalar_lea.vmem [#allocation2], %s217
        // Predicated region
        $region33: #{tpu_custom_call.1} parent=31 // pred_check
          %p219 = pneg %p44
        $region34: #{tpu_custom_call.1} parent=31 // pred_check_branch
          %221 = sbr.rel (%p219) target = $region36
        $region35: #{tpu_custom_call.1} parent=31 // pred_region
          %223 = dma.done %s215, 4096
        $region36: #{tpu_custom_call.1} parent=31 // pred_fallthru
          _
        %s224 = sand.u32 %s23, 1
        %s225 = scalar_lea.sflag [#allocation6], %s224
        %s226 = sand.u32 %s57, 1
        %s227 = smul.addr %s226, 256
        %s228 = scalar_lea.vmem [#allocation5], %s227
        // Predicated region
        $region37: #{tpu_custom_call.1} parent=31 // pred_check
          %p229 = pneg %p70
        $region38: #{tpu_custom_call.1} parent=31 // pred_check_branch
          %231 = sbr.rel (%p229) target = $region40
        $region39: #{tpu_custom_call.1} parent=31 // pred_region
          %233 = dma.done %s225, 4096
        $region40: #{tpu_custom_call.1} parent=31 // pred_fallthru
          _
        %s234 = sand.u32 %s23, 1
        %s235 = scalar_lea.sflag [#allocation6], %s234
        %s236 = sand.u32 %s83, 1
        %s237 = smul.addr %s236, 256
        %s238 = scalar_lea.vmem [#allocation7], %s237
        // Predicated region
        $region41: #{tpu_custom_call.1} parent=31 // pred_check
          %p239 = pneg %p96
        $region42: #{tpu_custom_call.1} parent=31 // pred_check_branch
          %241 = sbr.rel (%p239) target = $region44
        $region43: #{tpu_custom_call.1} parent=31 // pred_region
          %243 = dma.done %s235, 4096
        $region44: #{tpu_custom_call.1} parent=31 // pred_fallthru
          _
        %s244 = sand.u32 %s31, 1
        %s245 = scalar_lea.sflag [#allocation3], %s244
        %s246 = sand.u32 %s31, 1
        %s247 = smul.addr %s246, 256
        %s248 = scalar_lea.vmem [#allocation2], %s247
        %p249 = pneg %p44
        %p250 = pneg %p41
        %s251 = sand.u32 %s23, 1
        %s252 = scalar_lea.sflag [#allocation6], %s251
        %s253 = sand.u32 %s57, 1
        %s254 = smul.addr %s253, 256
        %s255 = scalar_lea.vmem [#allocation5], %s254
        %p256 = pneg %p70
        %p257 = pneg %p67
        %s258 = sand.u32 %s23, 1
        %s259 = scalar_lea.sflag [#allocation6], %s258
        %s260 = sand.u32 %s83, 1
        %s261 = smul.addr %s260, 256
        %s262 = scalar_lea.vmem [#allocation7], %s261
        %p263 = pneg %p96
        %p264 = pneg %p93
        %p265 = pneg %p122
        %p266 = pneg %p119
        %s267 = sand.u32 %s109, 1
        %s268 = scalar_lea.sflag [#allocation4], %s267
        %s269 = sand.u32 %s109, 1
        %s270 = smul.addr %s269, 8
        %s271 = scalar_lea.vmem [#allocation8], %s270
        %s272 = smul.u32 32, %s23
        %s273 = smul.u32 32, %s23
        %s274 = smul.u32 32, %s23
        %v275 = vld [vmem:[%s218] sm:$0xff]
        %v276 = vld [vmem:[%s218 + $0x8] sm:$0xff]
        %v277 = vld [vmem:[%s218 + $0x10] sm:$0xff]
        %v278 = vld [vmem:[%s218 + $0x18] sm:$0xff]
        %v279 = vld [vmem:[%s218 + $0x20] sm:$0xff]
        %v280 = vld [vmem:[%s218 + $0x28] sm:$0xff]
        %v281 = vld [vmem:[%s218 + $0x30] sm:$0xff]
        %v282 = vld [vmem:[%s218 + $0x38] sm:$0xff]
        %v283 = vld [vmem:[%s218 + $0x40] sm:$0xff]
        %v284 = vld [vmem:[%s218 + $0x48] sm:$0xff]
        %v285 = vld [vmem:[%s218 + $0x50] sm:$0xff]
        %v286 = vld [vmem:[%s218 + $0x58] sm:$0xff]
        %v287 = vld [vmem:[%s218 + $0x60] sm:$0xff]
        %v288 = vld [vmem:[%s218 + $0x68] sm:$0xff]
        %v289 = vld [vmem:[%s218 + $0x70] sm:$0xff]
        %v290 = vld [vmem:[%s218 + $0x78] sm:$0xff]
        %v291 = vld [vmem:[%s218 + $0x80] sm:$0xff]
        %v292 = vld [vmem:[%s218 + $0x88] sm:$0xff]
        %v293 = vld [vmem:[%s218 + $0x90] sm:$0xff]
        %v294 = vld [vmem:[%s218 + $0x98] sm:$0xff]
        %v295 = vld [vmem:[%s218 + $0xa0] sm:$0xff]
        %v296 = vld [vmem:[%s218 + $0xa8] sm:$0xff]
        %v297 = vld [vmem:[%s218 + $0xb0] sm:$0xff]
        %v298 = vld [vmem:[%s218 + $0xb8] sm:$0xff]
        %v299 = vld [vmem:[%s218 + $0xc0] sm:$0xff]
        %v300 = vld [vmem:[%s218 + $0xc8] sm:$0xff]
        %v301 = vld [vmem:[%s218 + $0xd0] sm:$0xff]
        %v302 = vld [vmem:[%s218 + $0xd8] sm:$0xff]
        %v303 = vld [vmem:[%s218 + $0xe0] sm:$0xff]
        %v304 = vld [vmem:[%s218 + $0xe8] sm:$0xff]
        %v305 = vld [vmem:[%s218 + $0xf0] sm:$0xff]
        %v306 = vld [vmem:[%s218 + $0xf8] sm:$0xff]
        %v307 = vld [vmem:[%s228] sm:$0xff]
        %v308 = vld [vmem:[%s228 + $0x8] sm:$0xff]
        %v309 = vld [vmem:[%s228 + $0x10] sm:$0xff]
        %v310 = vld [vmem:[%s228 + $0x18] sm:$0xff]
        %v311 = vld [vmem:[%s228 + $0x20] sm:$0xff]
        %v312 = vld [vmem:[%s228 + $0x28] sm:$0xff]
        %v313 = vld [vmem:[%s228 + $0x30] sm:$0xff]
        %v314 = vld [vmem:[%s228 + $0x38] sm:$0xff]
        %v315 = vld [vmem:[%s228 + $0x40] sm:$0xff]
        %v316 = vld [vmem:[%s228 + $0x48] sm:$0xff]
        %v317 = vld [vmem:[%s228 + $0x50] sm:$0xff]
        %v318 = vld [vmem:[%s228 + $0x58] sm:$0xff]
        %v319 = vld [vmem:[%s228 + $0x60] sm:$0xff]
        %v320 = vld [vmem:[%s228 + $0x68] sm:$0xff]
        %v321 = vld [vmem:[%s228 + $0x70] sm:$0xff]
        %v322 = vld [vmem:[%s228 + $0x78] sm:$0xff]
        %v323 = vld [vmem:[%s228 + $0x80] sm:$0xff]
        %v324 = vld [vmem:[%s228 + $0x88] sm:$0xff]
        %v325 = vld [vmem:[%s228 + $0x90] sm:$0xff]
        %v326 = vld [vmem:[%s228 + $0x98] sm:$0xff]
        %v327 = vld [vmem:[%s228 + $0xa0] sm:$0xff]
        %v328 = vld [vmem:[%s228 + $0xa8] sm:$0xff]
        %v329 = vld [vmem:[%s228 + $0xb0] sm:$0xff]
        %v330 = vld [vmem:[%s228 + $0xb8] sm:$0xff]
        %v331 = vld [vmem:[%s228 + $0xc0] sm:$0xff]
        %v332 = vld [vmem:[%s228 + $0xc8] sm:$0xff]
        %v333 = vld [vmem:[%s228 + $0xd0] sm:$0xff]
        %v334 = vld [vmem:[%s228 + $0xd8] sm:$0xff]
        %v335 = vld [vmem:[%s228 + $0xe0] sm:$0xff]
        %v336 = vld [vmem:[%s228 + $0xe8] sm:$0xff]
        %v337 = vld [vmem:[%s228 + $0xf0] sm:$0xff]
        %v338 = vld [vmem:[%s228 + $0xf8] sm:$0xff]
        %v339 = vld [vmem:[%s238] sm:$0xff]
        %v340 = vld [vmem:[%s238 + $0x8] sm:$0xff]
        %v341 = vld [vmem:[%s238 + $0x10] sm:$0xff]
        %v342 = vld [vmem:[%s238 + $0x18] sm:$0xff]
        %v343 = vld [vmem:[%s238 + $0x20] sm:$0xff]
        %v344 = vld [vmem:[%s238 + $0x28] sm:$0xff]
        %v345 = vld [vmem:[%s238 + $0x30] sm:$0xff]
        %v346 = vld [vmem:[%s238 + $0x38] sm:$0xff]
        %v347 = vld [vmem:[%s238 + $0x40] sm:$0xff]
        %v348 = vld [vmem:[%s238 + $0x48] sm:$0xff]
        %v349 = vld [vmem:[%s238 + $0x50] sm:$0xff]
        %v350 = vld [vmem:[%s238 + $0x58] sm:$0xff]
        %v351 = vld [vmem:[%s238 + $0x60] sm:$0xff]
        %v352 = vld [vmem:[%s238 + $0x68] sm:$0xff]
        %v353 = vld [vmem:[%s238 + $0x70] sm:$0xff]
        %v354 = vld [vmem:[%s238 + $0x78] sm:$0xff]
        %v355 = vld [vmem:[%s238 + $0x80] sm:$0xff]
        %v356 = vld [vmem:[%s238 + $0x88] sm:$0xff]
        %v357 = vld [vmem:[%s238 + $0x90] sm:$0xff]
        %v358 = vld [vmem:[%s238 + $0x98] sm:$0xff]
        %v359 = vld [vmem:[%s238 + $0xa0] sm:$0xff]
        %v360 = vld [vmem:[%s238 + $0xa8] sm:$0xff]
        %v361 = vld [vmem:[%s238 + $0xb0] sm:$0xff]
        %v362 = vld [vmem:[%s238 + $0xb8] sm:$0xff]
        %v363 = vld [vmem:[%s238 + $0xc0] sm:$0xff]
        %v364 = vld [vmem:[%s238 + $0xc8] sm:$0xff]
        %v365 = vld [vmem:[%s238 + $0xd0] sm:$0xff]
        %v366 = vld [vmem:[%s238 + $0xd8] sm:$0xff]
        %v367 = vld [vmem:[%s238 + $0xe0] sm:$0xff]
        %v368 = vld [vmem:[%s238 + $0xe8] sm:$0xff]
        %v369 = vld [vmem:[%s238 + $0xf0] sm:$0xff]
        %v370 = vld [vmem:[%s238 + $0xf8] sm:$0xff]
        %v371 = vsub.f32 %v275, %v307
        %v372 = vsub.f32 %v276, %v308
        %v373 = vsub.f32 %v277, %v309
        %v374 = vsub.f32 %v278, %v310
        %v375 = vsub.f32 %v279, %v311
        %v376 = vsub.f32 %v280, %v312
        %v377 = vsub.f32 %v281, %v313
        %v378 = vsub.f32 %v282, %v314
        %v379 = vsub.f32 %v283, %v315
        %v380 = vsub.f32 %v284, %v316
        %v381 = vsub.f32 %v285, %v317
        %v382 = vsub.f32 %v286, %v318
        %v383 = vsub.f32 %v287, %v319
        %v384 = vsub.f32 %v288, %v320
        %v385 = vsub.f32 %v289, %v321
        %v386 = vsub.f32 %v290, %v322
        %v387 = vsub.f32 %v291, %v323
        %v388 = vsub.f32 %v292, %v324
        %v389 = vsub.f32 %v293, %v325
        %v390 = vsub.f32 %v294, %v326
        %v391 = vsub.f32 %v295, %v327
        %v392 = vsub.f32 %v296, %v328
        %v393 = vsub.f32 %v297, %v329
        %v394 = vsub.f32 %v298, %v330
        %v395 = vsub.f32 %v299, %v331
        %v396 = vsub.f32 %v300, %v332
        %v397 = vsub.f32 %v301, %v333
        %v398 = vsub.f32 %v302, %v334
        %v399 = vsub.f32 %v303, %v335
        %v400 = vsub.f32 %v304, %v336
        %v401 = vsub.f32 %v305, %v337
        %v402 = vsub.f32 %v306, %v338
        %v403 = vmul.f32 %v339, %v371
        %v404 = vmul.f32 %v340, %v372
        %v405 = vmul.f32 %v341, %v373
        %v406 = vmul.f32 %v342, %v374
        %v407 = vmul.f32 %v343, %v375
        %v408 = vmul.f32 %v344, %v376
        %v409 = vmul.f32 %v345, %v377
        %v410 = vmul.f32 %v346, %v378
        %v411 = vmul.f32 %v347, %v379
        %v412 = vmul.f32 %v348, %v380
        %v413 = vmul.f32 %v349, %v381
        %v414 = vmul.f32 %v350, %v382
        %v415 = vmul.f32 %v351, %v383
        %v416 = vmul.f32 %v352, %v384
        %v417 = vmul.f32 %v353, %v385
        %v418 = vmul.f32 %v354, %v386
        %v419 = vmul.f32 %v355, %v387
        %v420 = vmul.f32 %v356, %v388
        %v421 = vmul.f32 %v357, %v389
        %v422 = vmul.f32 %v358, %v390
        %v423 = vmul.f32 %v359, %v391
        %v424 = vmul.f32 %v360, %v392
        %v425 = vmul.f32 %v361, %v393
        %v426 = vmul.f32 %v362, %v394
        %v427 = vmul.f32 %v363, %v395
        %v428 = vmul.f32 %v364, %v396
        %v429 = vmul.f32 %v365, %v397
        %v430 = vmul.f32 %v366, %v398
        %v431 = vmul.f32 %v367, %v399
        %v432 = vmul.f32 %v368, %v400
        %v433 = vmul.f32 %v369, %v401
        %v434 = vmul.f32 %v370, %v402
        %v435 = vsub.f32 0.5, %v403
        %v436 = vsub.f32 0.5, %v404
        %v437 = vsub.f32 0.5, %v405
        %v438 = vsub.f32 0.5, %v406
        %v439 = vsub.f32 0.5, %v407
        %v440 = vsub.f32 0.5, %v408
        %v441 = vsub.f32 0.5, %v409
        %v442 = vsub.f32 0.5, %v410
        %v443 = vsub.f32 0.5, %v411
        %v444 = vsub.f32 0.5, %v412
        %v445 = vsub.f32 0.5, %v413
        %v446 = vsub.f32 0.5, %v414
        %v447 = vsub.f32 0.5, %v415
        %v448 = vsub.f32 0.5, %v416
        %v449 = vsub.f32 0.5, %v417
        %v450 = vsub.f32 0.5, %v418
        %v451 = vsub.f32 0.5, %v419
        %v452 = vsub.f32 0.5, %v420
        %v453 = vsub.f32 0.5, %v421
        %v454 = vsub.f32 0.5, %v422
        %v455 = vsub.f32 0.5, %v423
        %v456 = vsub.f32 0.5, %v424
        %v457 = vsub.f32 0.5, %v425
        %v458 = vsub.f32 0.5, %v426
        %v459 = vsub.f32 0.5, %v427
        %v460 = vsub.f32 0.5, %v428
        %v461 = vsub.f32 0.5, %v429
        %v462 = vsub.f32 0.5, %v430
        %v463 = vsub.f32 0.5, %v431
        %v464 = vsub.f32 0.5, %v432
        %v465 = vsub.f32 0.5, %v433
        %v466 = vsub.f32 0.5, %v434
        %v467 = vmax.f32 %v435, 0.0
        %v468 = vmax.f32 %v436, 0.0
        %v469 = vmax.f32 %v437, 0.0
        %v470 = vmax.f32 %v438, 0.0
        %v471 = vmax.f32 %v439, 0.0
        %v472 = vmax.f32 %v440, 0.0
        %v473 = vmax.f32 %v441, 0.0
        %v474 = vmax.f32 %v442, 0.0
        %v475 = vmax.f32 %v443, 0.0
        %v476 = vmax.f32 %v444, 0.0
        %v477 = vmax.f32 %v445, 0.0
        %v478 = vmax.f32 %v446, 0.0
        %v479 = vmax.f32 %v447, 0.0
        %v480 = vmax.f32 %v448, 0.0
        %v481 = vmax.f32 %v449, 0.0
        %v482 = vmax.f32 %v450, 0.0
        %v483 = vmax.f32 %v451, 0.0
        %v484 = vmax.f32 %v452, 0.0
        %v485 = vmax.f32 %v453, 0.0
        %v486 = vmax.f32 %v454, 0.0
        %v487 = vmax.f32 %v455, 0.0
        %v488 = vmax.f32 %v456, 0.0
        %v489 = vmax.f32 %v457, 0.0
        %v490 = vmax.f32 %v458, 0.0
        %v491 = vmax.f32 %v459, 0.0
        %v492 = vmax.f32 %v460, 0.0
        %v493 = vmax.f32 %v461, 0.0
        %v494 = vmax.f32 %v462, 0.0
        %v495 = vmax.f32 %v463, 0.0
        %v496 = vmax.f32 %v464, 0.0
        %v497 = vmax.f32 %v465, 0.0
        %v498 = vmax.f32 %v466, 0.0
        %v499 = vadd.f32 %v467, %v475
        %v500 = vadd.f32 %v499, %v483
        %v501 = vadd.f32 %v500, %v491
        %v502 = vadd.f32 %v468, %v476
        %v503 = vadd.f32 %v502, %v484
        %v504 = vadd.f32 %v503, %v492
        %v505 = vadd.f32 %v469, %v477
        %v506 = vadd.f32 %v505, %v485
        %v507 = vadd.f32 %v506, %v493
        %v508 = vadd.f32 %v470, %v478
        %v509 = vadd.f32 %v508, %v486
        %v510 = vadd.f32 %v509, %v494
        %v511 = vadd.f32 %v471, %v479
        %v512 = vadd.f32 %v511, %v487
        %v513 = vadd.f32 %v512, %v495
        %v514 = vadd.f32 %v472, %v480
        %v515 = vadd.f32 %v514, %v488
        %v516 = vadd.f32 %v515, %v496
        %v517 = vadd.f32 %v473, %v481
        %v518 = vadd.f32 %v517, %v489
        %v519 = vadd.f32 %v518, %v497
        %v520 = vadd.f32 %v474, %v482
        %v521 = vadd.f32 %v520, %v490
        %v522 = vadd.f32 %v521, %v498
        %v523 = vadd.f32 %v501, %v504
        %v524 = vadd.f32 %v523, %v507
        %v525 = vadd.f32 %v524, %v510
        %v526 = vadd.f32 %v525, %v513
        %v527 = vadd.f32 %v526, %v516
        %v528 = vadd.f32 %v527, %v519
        %v529 = vadd.f32 %v528, %v522
        %530 = vst [vmem:[%s271] sm:$0xff] %v529
        %s531 = sand.u32 %s109, 1
        %s532 = scalar_lea.sflag [#allocation4], %s531
        %s533 = sand.u32 %s109, 1
        %s534 = smul.addr %s533, 8
        %s535 = scalar_lea.vmem [#allocation8], %s534
        // Predicated region
        $region45: #{tpu_custom_call.1} parent=31 // pred_check
          %p536 = pneg %p119
        $region46: #{tpu_custom_call.1} parent=31 // pred_check_branch
          %538 = sbr.rel (%p536) target = $region48
        $region47: #{tpu_custom_call.1} parent=31 // pred_region
          %540 = vsyncadd %s532, 0
          %s541 = smul.addr %s23, 8
          %s542 = scalar_lea.hbm %s3, %s541
          %s544 = sshll.u32 %s535, 4
          %s545 = int_to_ptr.vmem [resolvable:$true] %s544
          %s546 = sshll.u32 %s542, 4
          %s547 = int_to_ptr.hbm [resolvable:$true] %s546
          %549 = dma.vmem_to_hbm [thread:$0]  %s545, 128, %s547, %s532
        $region48: #{tpu_custom_call.1} parent=31 // pred_fallthru
          _
      $region32: #{tpu_custom_call.1} parent=5 // pred_fallthru
        _
      %p550 = scmp.le.s32.totalorder 2, %s18
      // Predicated region
      $region49: #{tpu_custom_call.1} parent=5 // pred_check
        %p551 = pneg %p550
      $region50: #{tpu_custom_call.1} parent=5 // pred_check_branch
        %553 = sbr.rel (%p551) target = $region52
      $region51: #{tpu_custom_call.1} parent=5 // pred_region
        %s554 = ssub.s32 %s18, 2
        // Predicated region
        $region53: #{tpu_custom_call.1} parent=51 // pred_check
          %p555 = pneg %p125
        $region54: #{tpu_custom_call.1} parent=51 // pred_check_branch
          %557 = sbr.rel (%p555) target = $region56
        $region55: #{tpu_custom_call.1} parent=51 // pred_region
          %s558 = sand.u32 %s110, 1
          %s559 = scalar_lea.sflag [#allocation4], %s558
          %s560 = sand.u32 %s110, 1
          %s561 = smul.addr %s560, 8
          %s562 = scalar_lea.vmem [#allocation8], %s561
          %564 = dma.done %s559, 128
        $region56: #{tpu_custom_call.1} parent=51 // pred_fallthru
          _
      $region52: #{tpu_custom_call.1} parent=5 // pred_fallthru
        _
    $region6: #{tpu_custom_call.1} parent=1 // loop_footer
      %s22 = sadd.s32 1, %s18
    $region7: #{tpu_custom_call.1} parent=1 // loop_footer_branch
      %17 = sbr.rel target = $region3
    $region8: #{tpu_custom_call.1} parent=1 // loop_exit
      _
    %565 = vsyncpa [#allocation3], 1
    %s566 = scalar_lea.sflag [#allocation3], 1
    %567 = vsyncpa %s566, 1
    %568 = vsyncpa [#allocation6], 1
    %s569 = scalar_lea.sflag [#allocation6], 1
    %570 = vsyncpa %s569, 1
    %571 = vsyncpa [#allocation4], 1
    %s572 = scalar_lea.sflag [#allocation4], 1
    %573 = vsyncpa %s572, 1

</llo_original>
